<compile_context>
chip_gen: v5e
topology: v5e:2x2
jax: 0.10.0
libtpu: 0.0.40
codegen_flags: <defaults>
</compile_context>

<pallas_src>
import math
import functools

import jax
import jax.numpy as jnp
from jax.experimental import pallas as pl
from jax.experimental.pallas import tpu as pltpu


def _cdiv(a, b):
    return (a + b - 1) // b


def _round_up(a, b):
    return _cdiv(a, b) * b


# ----------------------------------------------------------------------------
# Kernels
# ----------------------------------------------------------------------------
def _masked_operands(x_ref, w_ref, k, K, tk, ragged_k):
    """Load X/W tiles; zero the out-of-range K slice of the last ragged block."""
    x = x_ref[...]
    w = w_ref[...]
    if ragged_k:
        # Static flag: divisible-K problems emit no masking code at all.
        rem = K - k * tk  # valid K extent of this block (>= tk except last)
        col = jax.lax.broadcasted_iota(jnp.int32, x.shape, 1)
        row = jax.lax.broadcasted_iota(jnp.int32, w.shape, 0)
        x = jnp.where(col < rem, x, 0)
        w = jnp.where(row < rem, w, 0)
    return x, w


def _make_inplace_kernel(K, tk, ragged_k):
    """float32 output: bias-init the resident output block, accumulate into it."""

    def kernel(x_ref, w_ref, b_ref, o_ref):
        k = pl.program_id(2)

        @pl.when(k == 0)
        def _():
            o_ref[...] = jnp.broadcast_to(b_ref[...], o_ref.shape).astype(
                o_ref.dtype)

        x, w = _masked_operands(x_ref, w_ref, k, K, tk, ragged_k)
        o_ref[...] += jnp.dot(x, w, preferred_element_type=jnp.float32)

    return kernel


def _make_scratch_kernel(K, tk, ragged_k):
    """Low-precision output: f32 VMEM accumulator (bias-init), cast once at end."""

    def kernel(x_ref, w_ref, b_ref, o_ref, acc_ref):
        k = pl.program_id(2)

        @pl.when(k == 0)
        def _():
            acc_ref[...] = jnp.broadcast_to(b_ref[...], acc_ref.shape)

        x, w = _masked_operands(x_ref, w_ref, k, K, tk, ragged_k)
        acc_ref[...] += jnp.dot(x, w, preferred_element_type=jnp.float32)

        @pl.when(k == pl.num_programs(2) - 1)
        def _():
            o_ref[...] = acc_ref[...].astype(o_ref.dtype)

    return kernel


# ----------------------------------------------------------------------------
# Per-generation hardware info
# ----------------------------------------------------------------------------
def _device_kind():
    try:
        return jax.devices()[0].device_kind.lower()
    except Exception:  # pragma: no cover - defensive
        return ""


def _vmem_cap_bytes():
    """Safe double-buffered VMEM budget for the current TPU generation."""
    phys = None
    try:
        phys = getattr(pltpu.get_tpu_info(), "vmem_capacity_bytes", None)
    except Exception:
        phys = None
    if not phys:
        phys = (64 << 20) if "v7" in _device_kind() else (128 << 20)
    # Leave headroom for compiler-internal scratch / semaphores.
    return (56 << 20) if phys <= (64 << 20) else (100 << 20)


# ----------------------------------------------------------------------------
# Wrapper
# ----------------------------------------------------------------------------
@functools.partial(jax.jit, static_argnames=("tm", "tn", "tk", "compute_dtype"))
def my_linear(x, w, b=None, *, tm=512, tn=512, tk=1024,
              compute_dtype=jnp.bfloat16):
    M, K = x.shape
    Kw, N = w.shape
    assert K == Kw, f"in_features mismatch: {K} vs {Kw}"

    out_dtype = x.dtype
    cdt = jnp.dtype(compute_dtype) if compute_dtype is not None else jnp.dtype(
        x.dtype)

    if b is None:
        b = jnp.zeros((N,), jnp.float32)
    b2d = b.reshape(1, N).astype(jnp.float32)

    # Casts are no-ops when operands already match the compute dtype; pre-cast
    # static weights outside this call (see demo) to avoid a per-call f32->bf16
    # HBM pass over W.
    xc = x if x.dtype == cdt else x.astype(cdt)
    wc = w if w.dtype == cdt else w.astype(cdt)

    in_bytes = cdt.itemsize
    out_bytes = jnp.dtype(out_dtype).itemsize
    needs_scratch = jnp.dtype(out_dtype) != jnp.dtype(jnp.float32)

    # Clamp tiles to the problem; full-dim blocks are always layout-legal, so
    # tiny problems collapse to a single grid point.
    tm_e = M if M < tm else tm
    tn_e = N if N < tn else tn
    tk_e = K if K < tk else tk

    kind = _device_kind()
    two_tc = "v7" in kind  # v7x has 2 TensorCores per chip

    # Megacore: if the parallel grid would be 1x1 on a 2-TC chip, split one
    # dimension into two 256-aligned blocks so both cores get work.
    if two_tc and _cdiv(M, tm_e) == 1 and _cdiv(N, tn_e) == 1:
        if N >= 512:
            tn_e = _round_up(_cdiv(N, 2), 256)
        elif M >= 512:
            tm_e = _round_up(_cdiv(M, 2), 256)

    cap = _vmem_cap_bytes()

    def est_vmem(tm_, tn_, tk_, w_bufs=2):
        return (2 * tm_ * tk_ * in_bytes          # X  (double-buffered)
                + w_bufs * tk_ * tn_ * in_bytes   # W
                + 2 * tm_ * tn_ * out_bytes       # output
                + 2 * tn_ * 4                     # bias
                + (tm_ * tn_ * 4 if needs_scratch else 0))

    # Downsize oversized (user-supplied) tiles instead of failing compilation.
    while est_vmem(tm_e, tn_e, tk_e) > cap:
        if tk_e >= max(tm_e, tn_e) and tk_e > 512:
            tk_e = max(512, _round_up(tk_e // 2, 128))
        elif tn_e >= tm_e and tn_e > 256:
            tn_e = max(256, _round_up(tn_e // 2, 128))
        elif tm_e > 256:
            tm_e = max(256, _round_up(tm_e // 2, 8))
        elif tk_e > 128:
            tk_e = max(128, _round_up(tk_e // 2, 128))
        else:
            break

    ragged_k = (K % tk_e) != 0
    grid = (_cdiv(M, tm_e), _cdiv(N, tn_e), _cdiv(K, tk_e))

    kernel = (_make_scratch_kernel if needs_scratch
              else _make_inplace_kernel)(K, tk_e, ragged_k)
    scratch_shapes = (
        [pltpu.VMEM((tm_e, tn_e), jnp.float32)] if needs_scratch else [])

    # v5e: the streamed W DMA is the one most likely exposed against the
    # 197 TF/s MXU; use a 3-deep pipeline buffer on it when VMEM allows.
    deep_w = ("v5" in kind and grid[1] * grid[2] > 1
              and est_vmem(tm_e, tn_e, tk_e, w_bufs=3) <= cap)
    w_idx = lambda i, j, k: (k, j)
    w_spec = pl.BlockSpec((tk_e, tn_e), w_idx)
    if deep_w and hasattr(pl, "Buffered"):
        try:
            w_spec = pl.BlockSpec((tk_e, tn_e), w_idx,
                                  pipeline_mode=pl.Buffered(3))
        except TypeError:
            deep_w = False  # older jax without pipeline_mode kwarg

    est = est_vmem(tm_e, tn_e, tk_e, w_bufs=3 if deep_w else 2)
    # Always pass a limit (v5e scoped default is only 16 MiB); never shrink it
    # below 32 MiB, never exceed the per-generation safe cap.
    vmem_limit = int(min(cap, max(32 << 20, int(est * 1.25))))

    cost = pl.CostEstimate(
        flops=2 * M * N * K,
        transcendentals=0,
        bytes_accessed=(M * K + K * N) * in_bytes + M * N * out_bytes + N * 4,
    )

    return pl.pallas_call(
        kernel,
        out_shape=jax.ShapeDtypeStruct((M, N), out_dtype),
        grid_spec=pltpu.PrefetchScalarGridSpec(
            num_scalar_prefetch=0,
            grid=grid,
            in_specs=[
                pl.BlockSpec((tm_e, tk_e), lambda i, j, k: (i, k)),  # X tile
                w_spec,                                              # W tile
                pl.BlockSpec((1, tn_e), lambda i, j, k: (0, j)),     # bias
            ],
            out_specs=pl.BlockSpec((tm_e, tn_e), lambda i, j, k: (i, j)),
            scratch_shapes=scratch_shapes,
        ),
        compiler_params=pltpu.CompilerParams(
            dimension_semantics=("parallel", "parallel", "arbitrary"),
            vmem_limit_bytes=vmem_limit,
        ),
        cost_estimate=cost,
    )(xc, wc, b2d)


# ----------------------------------------------------------------------------
# Init mirroring the PyTorch module
# ----------------------------------------------------------------------------
def init_params(key, in_features, out_features):
    """Deterministic init mirroring the PyTorch module's shapes/distributions."""
    kw, kb = jax.random.split(key)
    # kaiming_uniform_(weight, a=0.01) on an (in_features, out_features) tensor:
    # torch's fan_in for a 2-D tensor is size(1) = out_features.
    a = 0.01
    gain = math.sqrt(2.0 / (1.0 + a * a))
    fan_in_kaiming = out_features
    bound_w = gain * math.sqrt(3.0 / fan_in_kaiming)
    weight = jax.random.uniform(
        kw, (in_features, out_features), jnp.float32, -bound_w, bound_w)
    bound_b = 1.0 / math.sqrt(fan_in_kaiming)
    bias = jax.random.uniform(
        kb, (out_features,), jnp.float32, -bound_b, bound_b)
    return weight, bias


if __name__ == "__main__":
    key = jax.random.PRNGKey(0)
    kx, kp, kx2, kp2 = jax.random.split(key, 4)

    # --- Small demo shape (collapses to a single grid point) ----------------
    M, in_features, out_features = 16, 256, 128
    x = jax.random.normal(kx, (M, in_features), jnp.float32)
    weight, bias = init_params(kp, in_features, out_features)
    ref = jnp.matmul(x, weight, precision=jax.lax.Precision.HIGHEST) + bias

    # Exact-f32 path.
    out_f32 = my_linear(x, weight, bias, compute_dtype=jnp.float32)
    jax.block_until_ready(out_f32)
    assert out_f32.shape == (M, out_features)
    assert jnp.allclose(out_f32, ref, atol=1e-3, rtol=1e-3)

    # Default fast path: weights pre-cast ONCE to bf16 (static weights), bf16
    # MXU feed, f32 accumulation, f32 output.
    w_bf16 = weight.astype(jnp.bfloat16)
    out_fast = my_linear(x, w_bf16, bias)
    jax.block_until_ready(out_fast)
    assert out_fast.dtype == jnp.float32
    assert jnp.allclose(out_fast, ref, atol=2e-1, rtol=5e-2)

    # Low-precision output path (exercises the scratch-accumulator kernel).
    out_lp = my_linear(x.astype(jnp.bfloat16), w_bf16, bias)
    jax.block_until_ready(out_lp)
    assert out_lp.dtype == jnp.bfloat16
    assert jnp.allclose(out_lp.astype(jnp.float32), ref, atol=3e-1, rtol=1e-1)

    # --- Ragged shape: tiled grid + in-kernel masking of the ragged K block --
    M2, K2, N2 = 300, 1000, 200
    x2 = jax.random.normal(kx2, (M2, K2), jnp.float32)
    weight2, bias2 = init_params(kp2, K2, N2)
    out2 = my_linear(x2, weight2, bias2, tm=128, tn=128, tk=256,
                     compute_dtype=jnp.float32)
    jax.block_until_ready(out2)
    ref2 = jnp.matmul(x2, weight2, precision=jax.lax.Precision.HIGHEST) + bias2
    assert out2.shape == (M2, N2)
    assert jnp.allclose(out2, ref2, atol=1e-3, rtol=1e-3)

    print("KERNEL_OK")
</pallas_src>

<mosaic_0001>
module attributes {stable_mosaic.version = 11 : i64} {
  func.func @kernel(%arg0: i32, %arg1: i32, %arg2: i32, %arg3: memref<16x256xf32, #tpu.memory_space<vmem>>, %arg4: memref<256x128xf32, #tpu.memory_space<vmem>>, %arg5: memref<1x128xf32, #tpu.memory_space<vmem>>, %arg6: memref<16x128xf32, #tpu.memory_space<vmem>>) attributes {dimension_semantics = [#tpu.dimension_semantics<parallel>, #tpu.dimension_semantics<parallel>, #tpu.dimension_semantics<arbitrary>], iteration_bounds = array<i64: 1, 1, 1>, scalar_prefetch = 0 : i64, scratch_operands = 0 : i64, tpu.core_type = #tpu.core_type<tc>, window_params = [{transform_indices = @transform_0, window_bounds = array<i64: 16, 256>}, {transform_indices = @transform_1, window_bounds = array<i64: 256, 128>}, {transform_indices = @transform_2, window_bounds = array<i64: 1, 128>}, {transform_indices = @transform_3, window_bounds = array<i64: 16, 128>}]} {
    %c0_i32 = arith.constant 0 : i32
    %0 = arith.cmpi eq, %arg2, %c0_i32 : i32
    %1 = arith.extui %0 : i1 to i32
    %c0_i32_0 = arith.constant 0 : i32
    %2 = arith.cmpi ne, %1, %c0_i32_0 : i32
    scf.if %2 {
      %c0_8 = arith.constant 0 : index
      %c0_9 = arith.constant 0 : index
      %9 = vector.load %arg5[%c0_8, %c0_9] : memref<1x128xf32, #tpu.memory_space<vmem>>, vector<1x128xf32>
      %10 = vector.shape_cast %9 : vector<1x128xf32> to vector<1x128xf32>
      %11 = vector.broadcast %10 : vector<1x128xf32> to vector<16x128xf32>
      %c0_10 = arith.constant 0 : index
      %c0_11 = arith.constant 0 : index
      %12 = vector.load %arg6[%c0_10, %c0_11] : memref<16x128xf32, #tpu.memory_space<vmem>>, vector<16x128xf32>
      tpu.vector_store %arg6[%c0_10, %c0_11], %11 {strides = array<i32>} : memref<16x128xf32, #tpu.memory_space<vmem>>, vector<16x128xf32>,
    } else {
    }
    %c0 = arith.constant 0 : index
    %c0_1 = arith.constant 0 : index
    %3 = vector.load %arg3[%c0, %c0_1] : memref<16x256xf32, #tpu.memory_space<vmem>>, vector<16x256xf32>
    %c0_2 = arith.constant 0 : index
    %c0_3 = arith.constant 0 : index
    %4 = vector.load %arg4[%c0_2, %c0_3] : memref<256x128xf32, #tpu.memory_space<vmem>>, vector<256x128xf32>
    %c0_4 = arith.constant 0 : index
    %c0_5 = arith.constant 0 : index
    %5 = vector.load %arg6[%c0_4, %c0_5] : memref<16x128xf32, #tpu.memory_space<vmem>>, vector<16x128xf32>
    %cst = arith.constant dense<0.000000e+00> : vector<16x128xf32>
    %6 = tpu.matmul %3, %4, %cst {dimension_numbers = #tpu.dot_dimension_numbers<[1], [0], [0], [1], [0, 0, 1, 1], [], []>} : vector<16x256xf32>, vector<256x128xf32>, vector<16x128xf32> -> vector<16x128xf32>
    %7 = arith.addf %5, %6 : vector<16x128xf32>
    %c0_6 = arith.constant 0 : index
    %c0_7 = arith.constant 0 : index
    %8 = vector.load %arg6[%c0_6, %c0_7] : memref<16x128xf32, #tpu.memory_space<vmem>>, vector<16x128xf32>
    tpu.vector_store %arg6[%c0_6, %c0_7], %7 {strides = array<i32>} : memref<16x128xf32, #tpu.memory_space<vmem>>, vector<16x128xf32>,
    return
  }
  func.func @transform_0(%arg0: i32, %arg1: i32, %arg2: i32) -> (i32, i32) {
    %c0_i32 = arith.constant 0 : i32
    return %arg0, %arg2 : i32, i32
  }
  func.func @transform_1(%arg0: i32, %arg1: i32, %arg2: i32) -> (i32, i32) {
    %c0_i32 = arith.constant 0 : i32
    return %arg2, %arg1 : i32, i32
  }
  func.func @transform_2(%arg0: i32, %arg1: i32, %arg2: i32) -> (i32, i32) {
    %c0_i32 = arith.constant 0 : i32
    %c0_i32_0 = arith.constant 0 : i32
    return %c0_i32, %arg1 : i32, i32
  }
  func.func @transform_3(%arg0: i32, %arg1: i32, %arg2: i32) -> (i32, i32) {
    %c0_i32 = arith.constant 0 : i32
    return %arg0, %arg1 : i32, i32
  }
}

</mosaic_0001>

<llo_original>
// kernel: my_linear.1
$region0: #{my_linear.1}
  #allocation0 [shape = 'u32[]', space=smem, size = 0x4, offset = 0x4, fixed_abs, tag = 'smem constant byte address 0x4 - core index']
  #allocation1 [shape = 'u32[72,128]{1,0:T(1,128)}', space=vmem, size = 0x9000, scoped, tag = 'internal scratch']
  %s0 = inlined_call_operand.hbm [shape: f32[16,256], index: 0, kind: input, shape index: {}]
  %s1 = inlined_call_operand.hbm [shape: f32[256,128], index: 1, kind: input, shape index: {}]
  %s2 = inlined_call_operand.vmem [shape: f32[1,128], index: 2, kind: input, shape index: {}]
  %s3 = inlined_call_operand.hbm [shape: f32[16,128], index: 3, kind: output, shape index: {}]
  %s4 = sld [smem:[#allocation0]]
  $region34: #{my_linear.1} parent=0
    _
  %s6 = ssub.s32 1, %s4
  %s7 = scalar_select 0, %s6, %s4
  $region1: #{my_linear.1} parent=0
    #allocation2 [shape = 'u8[16384]{0}', space=vmem, size = 0x4000, scoped, tag = 'input window, operand 0, single buffered']
    #allocation3 [shape = 's32[1]{0}', space=sflag, size = 0x4, scoped, tag = 'scoped memory for my_linear.1']
    #allocation4 [shape = 's32[1]{0}', space=sflag, size = 0x4, scoped, tag = 'scoped memory for my_linear.1']
    #allocation5 [shape = 'u8[131072]{0}', space=vmem, size = 0x20000, scoped, tag = 'input window, operand 1, single buffered']
    #allocation6 [shape = 's32[1]{0}', space=sflag, size = 0x4, scoped, tag = 'scoped memory for my_linear.1']
    #allocation7 [shape = 'u8[8192]{0}', space=vmem, size = 0x2000, scoped, tag = 'output window, operand 0, single buffered']
    %8 = vsyncpa [#allocation3], 0
    %9 = vsyncpa [#allocation6], 0
    %10 = vsyncpa [#allocation4], 0
    // Predicated region
    $region2: #{my_linear.1} parent=1 // pred_check
      _
    $region3: #{my_linear.1} parent=1 // pred_check_branch
      %12 = sbr.rel (0) target = $region5
    $region4: #{my_linear.1} parent=1 // pred_region
      %14 = vsyncadd [#allocation3], 0
      %s15 = sshll.u32 %s0, 4
      %s16 = int_to_ptr.hbm [resolvable:$true] %s15
      %s17 = sshll.u32 [#allocation2], 4
      %s18 = int_to_ptr.vmem [resolvable:$true] %s17
      %23 = dma.hbm_to_vmem [thread:$0]  %s16, 512, %s18, [#allocation3], 256, 256, 16
    $region5: #{my_linear.1} parent=1 // pred_fallthru
      _
    // Predicated region
    $region6: #{my_linear.1} parent=1 // pred_check
      _
    $region7: #{my_linear.1} parent=1 // pred_check_branch
      %25 = sbr.rel (0) target = $region9
    $region8: #{my_linear.1} parent=1 // pred_region
      %27 = vsyncadd [#allocation6], 0
      %s28 = sshll.u32 %s1, 4
      %s29 = int_to_ptr.hbm [resolvable:$true] %s28
      %s30 = sshll.u32 [#allocation5], 4
      %s31 = int_to_ptr.vmem [resolvable:$true] %s30
      %36 = dma.hbm_to_vmem [thread:$0]  %s29, 4096, %s31, [#allocation6], 128, 128, 8
    $region9: #{my_linear.1} parent=1 // pred_fallthru
      _
    // Predicated region
    $region10: #{my_linear.1} parent=1 // pred_check
      _
    $region11: #{my_linear.1} parent=1 // pred_check_branch
      %38 = sbr.rel (0) target = $region13
    $region12: #{my_linear.1} parent=1 // pred_region
      _
    $region13: #{my_linear.1} parent=1 // pred_fallthru
      _
    // Predicated region
    $region14: #{my_linear.1} parent=1 // pred_check
      _
    $region15: #{my_linear.1} parent=1 // pred_check_branch
      %40 = sbr.rel (0) target = $region17
    $region16: #{my_linear.1} parent=1 // pred_region
      %42 = dma.done [#allocation3], 512
    $region17: #{my_linear.1} parent=1 // pred_fallthru
      _
    // Predicated region
    $region18: #{my_linear.1} parent=1 // pred_check
      _
    $region19: #{my_linear.1} parent=1 // pred_check_branch
      %44 = sbr.rel (0) target = $region21
    $region20: #{my_linear.1} parent=1 // pred_region
      %46 = dma.done [#allocation6], 4096
    $region21: #{my_linear.1} parent=1 // pred_fallthru
      _
    %p47 = scmp.eq.s32.totalorder 0, 0
    // Predicated region
    $region22: #{my_linear.1} parent=1 // pred_check
      %p48 = pneg %p47
    $region23: #{my_linear.1} parent=1 // pred_check_branch
      %50 = sbr.rel (%p48) target = $region25
    $region24: #{my_linear.1} parent=1 // pred_region
      %v51 = vld [vmem:[%s2] sm:$0x1]
      %v53 = vperm.slane %v51, 0
      %55 = vst [vmem:[#allocation7] sm:$0xff] %v53
      %56 = vst [vmem:[#allocation7 + $0x8] sm:$0xff] %v53
    $region25: #{my_linear.1} parent=1 // pred_fallthru
      _
    %v57 = vld [vmem:[#allocation2] sm:$0xff]
    %v58 = vld [vmem:[#allocation2 + $0x8] sm:$0xff]
    %v59 = vld [vmem:[#allocation2 + $0x10] sm:$0xff]
    %v60 = vld [vmem:[#allocation2 + $0x18] sm:$0xff]
    %v61 = vld [vmem:[#allocation5] sm:$0xff]
    %v62 = vld [vmem:[#allocation5 + $0x8] sm:$0xff]
    %v63 = vld [vmem:[#allocation5 + $0x10] sm:$0xff]
    %v64 = vld [vmem:[#allocation5 + $0x18] sm:$0xff]
    %v65 = vld [vmem:[#allocation5 + $0x20] sm:$0xff]
    %v66 = vld [vmem:[#allocation5 + $0x28] sm:$0xff]
    %v67 = vld [vmem:[#allocation5 + $0x30] sm:$0xff]
    %v68 = vld [vmem:[#allocation5 + $0x38] sm:$0xff]
    %v69 = vld [vmem:[#allocation5 + $0x40] sm:$0xff]
    %v70 = vld [vmem:[#allocation5 + $0x48] sm:$0xff]
    %v71 = vld [vmem:[#allocation5 + $0x50] sm:$0xff]
    %v72 = vld [vmem:[#allocation5 + $0x58] sm:$0xff]
    %v73 = vld [vmem:[#allocation5 + $0x60] sm:$0xff]
    %v74 = vld [vmem:[#allocation5 + $0x68] sm:$0xff]
    %v75 = vld [vmem:[#allocation5 + $0x70] sm:$0xff]
    %v76 = vld [vmem:[#allocation5 + $0x78] sm:$0xff]
    %v77 = vld [vmem:[#allocation5 + $0x80] sm:$0xff]
    %v78 = vld [vmem:[#allocation5 + $0x88] sm:$0xff]
    %v79 = vld [vmem:[#allocation5 + $0x90] sm:$0xff]
    %v80 = vld [vmem:[#allocation5 + $0x98] sm:$0xff]
    %v81 = vld [vmem:[#allocation5 + $0xa0] sm:$0xff]
    %v82 = vld [vmem:[#allocation5 + $0xa8] sm:$0xff]
    %v83 = vld [vmem:[#allocation5 + $0xb0] sm:$0xff]
    %v84 = vld [vmem:[#allocation5 + $0xb8] sm:$0xff]
    %v85 = vld [vmem:[#allocation5 + $0xc0] sm:$0xff]
    %v86 = vld [vmem:[#allocation5 + $0xc8] sm:$0xff]
    %v87 = vld [vmem:[#allocation5 + $0xd0] sm:$0xff]
    %v88 = vld [vmem:[#allocation5 + $0xd8] sm:$0xff]
    %v89 = vld [vmem:[#allocation5 + $0xe0] sm:$0xff]
    %v90 = vld [vmem:[#allocation5 + $0xe8] sm:$0xff]
    %v91 = vld [vmem:[#allocation5 + $0xf0] sm:$0xff]
    %v92 = vld [vmem:[#allocation5 + $0xf8] sm:$0xff]
    %v93 = vld [vmem:[#allocation7] sm:$0xff]
    %v94 = vld [vmem:[#allocation7 + $0x8] sm:$0xff]
    %95 = vmatpush.msra.mxu0 %v76
    %96 = vmatpush.msra.mxu0 %v75
    %97 = vmatpush.msra.mxu0 %v74
    %98 = vmatpush.msra.mxu0 %v73
    %99 = vmatpush.msra.mxu0 %v72
    %100 = vmatpush.msra.mxu0 %v71
    %101 = vmatpush.msra.mxu0 %v70
    %102 = vmatpush.msra.mxu0 %v69
    %103 = vmatpush.msra.mxu0 %v68
    %104 = vmatpush.msra.mxu0 %v67
    %105 = vmatpush.msra.mxu0 %v66
    %106 = vmatpush.msra.mxu0 %v65
    %107 = vmatpush.msra.mxu0 %v64
    %108 = vmatpush.msra.mxu0 %v63
    %109 = vmatpush.msra.mxu0 %v62
    %110 = vmatpush.msra.mxu0 %v61
    %111 = vmatmul.f32.gmra.mxu0 %v57
    %v112 = vpop.f32.mrf.mxu0
    %v113 = vadd.f32 0.0, %v112
    %114 = vmatmul.f32.gmra.mxu0 %v59
    %v115 = vpop.f32.mrf.mxu0
    %v116 = vadd.f32 0.0, %v115
    %117 = vdwg.mxu0
    %118 = vmatpush.msra.mxu0 %v92
    %119 = vmatpush.msra.mxu0 %v91
    %120 = vmatpush.msra.mxu0 %v90
    %121 = vmatpush.msra.mxu0 %v89
    %122 = vmatpush.msra.mxu0 %v88
    %123 = vmatpush.msra.mxu0 %v87
    %124 = vmatpush.msra.mxu0 %v86
    %125 = vmatpush.msra.mxu0 %v85
    %126 = vmatpush.msra.mxu0 %v84
    %127 = vmatpush.msra.mxu0 %v83
    %128 = vmatpush.msra.mxu0 %v82
    %129 = vmatpush.msra.mxu0 %v81
    %130 = vmatpush.msra.mxu0 %v80
    %131 = vmatpush.msra.mxu0 %v79
    %132 = vmatpush.msra.mxu0 %v78
    %133 = vmatpush.msra.mxu0 %v77
    %134 = vmatmul.f32.gmra.mxu0 %v58
    %v135 = vpop.f32.mrf.mxu0
    %v136 = vadd.f32 %v113, %v135
    %137 = vmatmul.f32.gmra.mxu0 %v60
    %v138 = vpop.f32.mrf.mxu0
    %v139 = vadd.f32 %v116, %v138
    %140 = vdwg.mxu0
    %v141 = vadd.f32 %v93, %v136
    %v142 = vadd.f32 %v94, %v139
    %143 = vst [vmem:[#allocation7] sm:$0xff] %v141
    %144 = vst [vmem:[#allocation7 + $0x8] sm:$0xff] %v142
    // Predicated region
    $region26: #{my_linear.1} parent=1 // pred_check
      _
    $region27: #{my_linear.1} parent=1 // pred_check_branch
      %146 = sbr.rel (0) target = $region29
    $region28: #{my_linear.1} parent=1 // pred_region
      %148 = vsyncadd [#allocation4], 0
      %s149 = sshll.u32 [#allocation7], 4
      %s150 = int_to_ptr.vmem [resolvable:$true] %s149
      %s151 = sshll.u32 %s3, 4
      %s152 = int_to_ptr.hbm [resolvable:$true] %s151
      %157 = dma.vmem_to_hbm [thread:$0]  %s150, 256, %s152, [#allocation4], 128, 128, 8
    $region29: #{my_linear.1} parent=1 // pred_fallthru
      _
    // Predicated region
    $region30: #{my_linear.1} parent=1 // pred_check
      _
    $region31: #{my_linear.1} parent=1 // pred_check_branch
      %159 = sbr.rel (0) target = $region33
    $region32: #{my_linear.1} parent=1 // pred_region
      %161 = dma.done [#allocation4], 256
    $region33: #{my_linear.1} parent=1 // pred_fallthru
      _
    %162 = vsyncpa [#allocation3], 1
    %163 = vsyncpa [#allocation6], 1
    %164 = vsyncpa [#allocation4], 1

</llo_original>
